<compile_context>
chip_gen: v7x
topology: tpu7x:2x2x1
jax: 0.10.0
libtpu: 0.0.40
codegen_flags: <defaults>
</compile_context>

<pallas_src>
import functools

import jax
import jax.numpy as jnp
from jax.experimental import pallas as pl
from jax.experimental.pallas import tpu as pltpu


def _round_up(x, m):
    return (x + m - 1) // m * m


def _tpu_vmem_bytes():
    try:
        return int(pltpu.get_tpu_info().vmem_capacity_bytes)
    except Exception:
        return 64 * 1024 * 1024          # safe lower bound (v7x)


def _num_tensorcores():
    """2 for chips whose TensorCores split 'parallel' grid axes, else 1."""
    try:
        kind = jax.devices()[0].device_kind.lower()
    except Exception:
        return 1
    return 2 if ("v7" in kind or "v4" in kind or "v5p" in kind) else 1


def _vmem_limit_bytes(block_bytes):
    cap = _tpu_vmem_bytes()
    limit = int(block_bytes * 1.25) + (4 << 20)
    limit = max(limit, 32 << 20)
    return int(min(limit, int(cap * 0.9)))


# ----------------------------------------------------------------------------
# Kernel 1: fused 1x1 conv (BN scale folded into weights) + BN bias + LIF
#   grid = (token_tiles, T), T innermost; membrane potential in VMEM scratch.
# ----------------------------------------------------------------------------
def _conv_bn_lif_kernel(x_ref, w_ref, b_ref, o_ref, v_mem, *, inv_tau, v_th):
    @pl.when(pl.program_id(1) == 0)
    def _():
        v_mem[...] = jnp.zeros_like(v_mem)

    w = w_ref[...]
    # Cast the activation to the weight dtype inside the kernel (no wrapper-side
    # HBM cast pass):  f32 x f32 for the real-valued input conv, bf16 x bf16 for
    # the spike convs; f32 accumulation on the MXU either way.
    y = jnp.dot(x_ref[0].astype(w.dtype), w, preferred_element_type=jnp.float32)
    y = y + b_ref[...]

    # LIF: H = V + (X - V)/tau ; spike ; hard reset to v_reset = 0.
    v = v_mem[...]
    h = v + (y - v) * inv_tau
    spike = h >= v_th
    v_mem[...] = jnp.where(spike, 0.0, h)
    o_ref[0] = spike.astype(o_ref.dtype)


def conv_bn_lif(x_tok, w_fold, bias, *, tau=2.0, v_th=1.0,
                out_dtype=jnp.bfloat16):
    """Fused 1x1-conv + folded-BN + multi-step LIF.

    x_tok : (T, M, Cin) channels-last tokens (f32 activations or bf16 spikes)
    w_fold: (Cin, Cout) weight, BN scale folded into columns (dtype = MXU dtype)
    bias  : (Cout,)     folded BN bias
    returns (T, M, Cout) 0/1 spikes in `out_dtype`.
    """
    T, M, Cin = x_tok.shape
    Cout = w_fold.shape[1]
    in_sz = jnp.dtype(x_tok.dtype).itemsize
    w_sz = jnp.dtype(w_fold.dtype).itemsize
    out_sz = jnp.dtype(out_dtype).itemsize

    ntc = _num_tensorcores()
    cap = _tpu_vmem_bytes()

    # Per-token-row VMEM bytes (double-buffered in/out blocks + f32 membrane)
    # and the resident weight/bias footprint.
    row_bytes = 2 * Cin * in_sz + 2 * Cout * out_sz + 4 * Cout
    fixed_bytes = 2 * Cin * Cout * w_sz + 2 * 4 * Cout
    budget = min(int(cap * 0.6), 48 << 20) - fixed_bytes

    tm = max(8, min(1024, budget // max(1, row_bytes)))
    # Split the token axis across TensorCores only when >1 TC exists.
    tm = min(tm, _round_up(pl.cdiv(M, ntc), 8))
    tm = _round_up(max(tm, 8), 8)

    M_pad = _round_up(M, tm)
    if M_pad != M:  # fallback only; tile choice above avoids this when possible
        x_tok = jnp.pad(x_tok, ((0, 0), (0, M_pad - M), (0, 0)))

    block_bytes = fixed_bytes + tm * row_bytes
    bias2 = bias.reshape(1, Cout).astype(jnp.float32)

    out = pl.pallas_call(
        functools.partial(_conv_bn_lif_kernel, inv_tau=1.0 / tau, v_th=v_th),
        out_shape=jax.ShapeDtypeStruct((T, M_pad, Cout), out_dtype),
        grid_spec=pltpu.PrefetchScalarGridSpec(
            num_scalar_prefetch=0,
            grid=(M_pad // tm, T),
            in_specs=[
                pl.BlockSpec((1, tm, Cin), lambda i, t: (t, i, 0)),
                pl.BlockSpec((Cin, Cout), lambda i, t: (0, 0)),
                pl.BlockSpec((1, Cout), lambda i, t: (0, 0)),
            ],
            out_specs=pl.BlockSpec((1, tm, Cout), lambda i, t: (t, i, 0)),
            scratch_shapes=[pltpu.VMEM((tm, Cout), jnp.float32)],
        ),
        compiler_params=pltpu.CompilerParams(
            dimension_semantics=("parallel", "arbitrary"),
            vmem_limit_bytes=_vmem_limit_bytes(block_bytes)),
    )(x_tok, w_fold, bias2)
    if M_pad != M:
        out = out[:, :M, :]
    return out


# ----------------------------------------------------------------------------
# Kernel 2: local spiking attention + fused attn-LIF (v_th = 0.5)
#   Reads the (T, M, 3C) QKV spike tensor directly (head split fused in) and
#   writes token-major (T, M, C).  grid = (window_tiles, T), T innermost.
# ----------------------------------------------------------------------------
def _attn_lif_kernel(qkv_ref, o_ref, v_mem, *, wb, n, heads, d,
                     inv_tau, v_th, scale):
    @pl.when(pl.program_id(1) == 0)
    def _():
        v_mem[...] = jnp.zeros_like(v_mem)

    c = heads * d
    xs = qkv_ref[0]                                  # (wb*n, 3C) bf16 spikes

    outs = []
    for h in range(heads):                           # static per-head loop
        q_h = xs[:, h * d:(h + 1) * d].reshape(wb, n, d)
        k_h = xs[:, c + h * d:c + (h + 1) * d].reshape(wb, n, d)
        v_h = xs[:, 2 * c + h * d:2 * c + (h + 1) * d].reshape(wb, n, d)
        attn = jnp.einsum("wnd,wmd->wnm", q_h, k_h,
                          preferred_element_type=jnp.float32)
        # QK^T scores are small integers -> exact in bf16 for d <= 256.
        p = attn.astype(q_h.dtype) if d <= 256 else attn
        y_h = jnp.einsum("wnm,wmd->wnd", p, v_h,
                         preferred_element_type=jnp.float32)
        outs.append(y_h)

    # channel order c = head*d + i  ->  matches the projection conv's input.
    y = jnp.concatenate(outs, axis=-1).reshape(wb * n, c) * scale

    v = v_mem[...]
    h_pot = v + (y - v) * inv_tau
    spike = h_pot >= v_th
    v_mem[...] = jnp.where(spike, 0.0, h_pot)
    o_ref[0] = spike.astype(o_ref.dtype)


def local_attn_lif(qkv_spk, *, window, heads, tau=2.0, v_th=0.5, scale=0.125,
                   out_dtype=jnp.bfloat16):
    """qkv_spk: (T, M, 3C) 0/1 spikes (M = windows*window, cols = [Q|K|V]).
    Returns (T, M, C) attn-LIF spikes in token-major layout."""
    T, M, C3 = qkv_spk.shape
    C = C3 // 3
    d = C // heads
    N = window
    B = M // N
    assert B * N == M and heads * d == C

    in_sz = jnp.dtype(qkv_spk.dtype).itemsize
    out_sz = jnp.dtype(out_dtype).itemsize
    ntc = _num_tensorcores()
    cap = _tpu_vmem_bytes()

    row_bytes = 2 * C3 * in_sz + 2 * C * out_sz + 4 * C
    budget = min(int(cap * 0.6), 48 << 20)
    wb = max(1, min(B, budget // max(1, N * row_bytes)))   # windows per step
    if ntc > 1:
        wb = min(wb, pl.cdiv(B, ntc))
    # wb must divide B (whole windows per tile, no padding) and wb*N must
    # satisfy the sublane constraint (multiple of 8) or equal full M.
    while wb > 1 and (B % wb != 0 or ((wb * N) % 8 != 0 and wb * N != M)):
        wb -= 1
    if (wb * N) % 8 != 0 and wb * N != M:
        wb = B                                             # full-M block is legal
    tm = wb * N

    block_bytes = tm * row_bytes
    spec_in = pl.BlockSpec((1, tm, C3), lambda i, t: (t, i, 0))
    spec_out = pl.BlockSpec((1, tm, C), lambda i, t: (t, i, 0))

    return pl.pallas_call(
        functools.partial(_attn_lif_kernel, wb=wb, n=N, heads=heads, d=d,
                          inv_tau=1.0 / tau, v_th=v_th, scale=scale),
        out_shape=jax.ShapeDtypeStruct((T, M, C), out_dtype),
        grid_spec=pltpu.PrefetchScalarGridSpec(
            num_scalar_prefetch=0,
            grid=(M // tm, T),
            in_specs=[spec_in],
            out_specs=spec_out,
            scratch_shapes=[pltpu.VMEM((tm, C), jnp.float32)],
        ),
        compiler_params=pltpu.CompilerParams(
            dimension_semantics=("parallel", "arbitrary"),
            vmem_limit_bytes=_vmem_limit_bytes(block_bytes)),
    )(qkv_spk)


# ----------------------------------------------------------------------------
# Module glue (pure JAX reshapes / permutes on small tensors)
# ----------------------------------------------------------------------------
def partition(x, n):
    T, B, C, H, W = x.shape
    x = x.reshape(T, B, C, H // n, n, W // n, n)
    x = x.transpose(0, 1, 4, 6, 2, 3, 5)
    return x.reshape(T, B * n * n, C, H // n, W // n)


def integration(x, n, B0):
    T, Bnn, C, Hn, Wn = x.shape
    x = x.reshape(T, B0, n, n, C, Hn, Wn)
    x = x.transpose(0, 1, 4, 5, 2, 6, 3)
    return x.reshape(T, B0, C, Hn * n, Wn * n)


def local_ssa_forward(x, params, *, num_heads=8, num_hw=2):
    T, B0, C, H0, W0 = x.shape
    xp = partition(x, num_hw)                              # (T, B, C, H, W)
    T, B, C, H, W = xp.shape
    N = H * W
    M = B * N                                              # tokens per timestep

    # Channels-last tokens: token index m = b*N + (h*W + w).
    x_tok = xp.transpose(0, 1, 3, 4, 2).reshape(T, M, C)

    # --- Fused Q/K/V projection: one (M, C) @ (C, 3C) matmul + BN + LIF ------
    # Real-valued f32 input -> keep f32 MXU operands (mem-bound, bit-accurate).
    w_qkv = jnp.concatenate(
        [params["q_w"].T * params["q_scale"][None, :],
         params["k_w"].T * params["k_scale"][None, :],
         params["v_w"].T * params["v_scale"][None, :]], axis=1).astype(jnp.float32)
    b_qkv = jnp.concatenate(
        [params["q_bias"], params["k_bias"], params["v_bias"]])
    qkv_spk = conv_bn_lif(x_tok, w_qkv, b_qkv, tau=2.0, v_th=1.0,
                          out_dtype=jnp.bfloat16)          # (T, M, 3C) spikes

    # --- Local attention (q @ k^T) @ v * 0.125 + fused attn-LIF --------------
    # Head split/merge fused into the kernel; output is already token-major.
    att = local_attn_lif(qkv_spk, window=N, heads=num_heads, tau=2.0, v_th=0.5,
                         scale=0.125, out_dtype=jnp.bfloat16)   # (T, M, C)

    # --- Projection conv + BN + LIF (bf16 spike operands, exact) -------------
    w_p = (params["p_w"].T * params["p_scale"][None, :]).astype(jnp.bfloat16)
    y = conv_bn_lif(att, w_p, params["p_bias"], tau=2.0, v_th=1.0,
                    out_dtype=jnp.bfloat16)                 # (T, M, C) spikes

    # Epilogue layout ops run on bf16 (half the HBM traffic); cast at the end.
    y = y.reshape(T, B, H, W, C).transpose(0, 1, 4, 2, 3)   # (T, B, C, H, W)
    y = integration(y, num_hw, B0)
    return y.astype(jnp.float32)


# ----------------------------------------------------------------------------
# Deterministic parameter initialization (synthetic; inference-mode BN folded)
# ----------------------------------------------------------------------------
def init_params(key, dim):
    eps = 1e-5
    params = {}
    for name in ("q", "k", "v", "p"):
        key, kw, kg, kb, km, kv = jax.random.split(key, 6)
        w = jax.random.normal(kw, (dim, dim), jnp.float32) * (1.0 / jnp.sqrt(dim))
        gamma = 1.0 + 0.1 * jax.random.normal(kg, (dim,), jnp.float32)
        beta = 0.1 * jax.random.normal(kb, (dim,), jnp.float32)
        mean = 0.1 * jax.random.normal(km, (dim,), jnp.float32)
        var = 1.0 + 0.1 * jnp.abs(jax.random.normal(kv, (dim,), jnp.float32))
        scale = gamma / jnp.sqrt(var + eps)
        bias = beta - mean * scale
        params[f"{name}_w"] = w
        params[f"{name}_scale"] = scale
        params[f"{name}_bias"] = bias
    return params


if __name__ == "__main__":
    # T=2, batch=2, dim=32, 8x8 spatial, num_hw=2 -> 4x4 windows, 8 heads of 4.
    # After partition: B=8 windows, N=16 tokens/window, M=128 tokens/timestep.
    T, B, dim, H, W = 2, 2, 32, 8, 8
    num_heads, num_hw = 8, 2

    key = jax.random.PRNGKey(0)
    key, kx = jax.random.split(key)
    x = 2.5 * jax.random.normal(kx, (T, B, dim, H, W), jnp.float32)

    params = init_params(key, dim)

    out = local_ssa_forward(x, params, num_heads=num_heads, num_hw=num_hw)
    out = jax.block_until_ready(out)

    assert out.shape == (T, B, dim, H, W), out.shape
    assert out.dtype == jnp.float32
    print("KERNEL_OK")
</pallas_src>

<mosaic_0001>
module attributes {stable_mosaic.version = 11 : i64} {
  func.func @_conv_bn_lif_kernel(%arg0: i32, %arg1: i32, %arg2: memref<1x128x32xf32, #tpu.memory_space<vmem>>, %arg3: memref<32x96xf32, #tpu.memory_space<vmem>>, %arg4: memref<1x96xf32, #tpu.memory_space<vmem>>, %arg5: memref<1x128x96xbf16, #tpu.memory_space<vmem>>, %arg6: memref<128x96xf32, #tpu.memory_space<vmem>>) attributes {dimension_semantics = [#tpu.dimension_semantics<parallel>, #tpu.dimension_semantics<arbitrary>], iteration_bounds = array<i64: 1, 2>, scalar_prefetch = 0 : i64, scratch_operands = 1 : i64, tpu.core_type = #tpu.core_type<tc>, window_params = [{transform_indices = @transform_0, window_bounds = array<i64: 1, 128, 32>}, {pipeline_mode = #tpu.pipeline_mode<synchronous>, transform_indices = @transform_1, window_bounds = array<i64: 32, 96>}, {pipeline_mode = #tpu.pipeline_mode<synchronous>, transform_indices = @transform_2, window_bounds = array<i64: 1, 96>}, {transform_indices = @transform_3, window_bounds = array<i64: 1, 128, 96>}]} {
    %c0_i32 = arith.constant 0 : i32
    %0 = arith.cmpi eq, %arg1, %c0_i32 : i32
    %1 = arith.extui %0 : i1 to i32
    %c0_i32_0 = arith.constant 0 : i32
    %2 = arith.cmpi ne, %1, %c0_i32_0 : i32
    scf.if %2 {
      %cst_17 = arith.constant 0.000000e+00 : f32
      %26 = vector.broadcast %cst_17 : f32 to vector<128x96xf32>
      %c0_18 = arith.constant 0 : index
      %c0_19 = arith.constant 0 : index
      %27 = vector.load %arg6[%c0_18, %c0_19] : memref<128x96xf32, #tpu.memory_space<vmem>>, vector<128x96xf32>
      tpu.vector_store %arg6[%c0_18, %c0_19], %26 {strides = array<i32>} : memref<128x96xf32, #tpu.memory_space<vmem>>, vector<128x96xf32>,
    } else {
    }
    %c0 = arith.constant 0 : index
    %c0_1 = arith.constant 0 : index
    %3 = vector.load %arg3[%c0, %c0_1] : memref<32x96xf32, #tpu.memory_space<vmem>>, vector<32x96xf32>
    %c0_2 = arith.constant 0 : index
    %c0_3 = arith.constant 0 : index
    %c0_4 = arith.constant 0 : index
    %4 = vector.load %arg2[%c0_2, %c0_3, %c0_4] : memref<1x128x32xf32, #tpu.memory_space<vmem>>, vector<1x128x32xf32>
    %5 = vector.shape_cast %4 : vector<1x128x32xf32> to vector<128x32xf32>
    %cst = arith.constant dense<0.000000e+00> : vector<128x96xf32>
    %6 = tpu.matmul %5, %3, %cst {dimension_numbers = #tpu.dot_dimension_numbers<[1], [0], [0], [1], [0, 0, 1, 1], [], []>} : vector<128x32xf32>, vector<32x96xf32>, vector<128x96xf32> -> vector<128x96xf32>
    %c0_5 = arith.constant 0 : index
    %c0_6 = arith.constant 0 : index
    %7 = vector.load %arg4[%c0_5, %c0_6] : memref<1x96xf32, #tpu.memory_space<vmem>>, vector<1x96xf32>
    %8 = vector.broadcast %7 : vector<1x96xf32> to vector<128x96xf32>
    %9 = arith.addf %6, %8 : vector<128x96xf32>
    %c0_7 = arith.constant 0 : index
    %c0_8 = arith.constant 0 : index
    %10 = vector.load %arg6[%c0_7, %c0_8] : memref<128x96xf32, #tpu.memory_space<vmem>>, vector<128x96xf32>
    %11 = arith.subf %9, %10 : vector<128x96xf32>
    %cst_9 = arith.constant 5.000000e-01 : f32
    %12 = vector.broadcast %cst_9 : f32 to vector<128x96xf32>
    %13 = arith.mulf %11, %12 : vector<128x96xf32>
    %14 = arith.addf %10, %13 : vector<128x96xf32>
    %cst_10 = arith.constant 1.000000e+00 : f32
    %15 = vector.broadcast %cst_10 : f32 to vector<128x96xf32>
    %16 = arith.cmpf oge, %14, %15 : vector<128x96xf32>
    %cst_11 = arith.constant 0.000000e+00 : f32
    %17 = vector.broadcast %cst_11 : f32 to vector<128x96xf32>
    %18 = arith.select %16, %17, %14 : vector<128x96xi1>, vector<128x96xf32>
    %c0_12 = arith.constant 0 : index
    %c0_13 = arith.constant 0 : index
    %19 = vector.load %arg6[%c0_12, %c0_13] : memref<128x96xf32, #tpu.memory_space<vmem>>, vector<128x96xf32>
    tpu.vector_store %arg6[%c0_12, %c0_13], %18 {strides = array<i32>} : memref<128x96xf32, #tpu.memory_space<vmem>>, vector<128x96xf32>,
    %20 = arith.extui %16 : vector<128x96xi1> to vector<128x96xi32>
    %21 = arith.sitofp %20 : vector<128x96xi32> to vector<128x96xf32>
    %22 = arith.truncf %21 : vector<128x96xf32> to vector<128x96xbf16>
    %c0_14 = arith.constant 0 : index
    %c0_15 = arith.constant 0 : index
    %c0_16 = arith.constant 0 : index
    %23 = vector.load %arg5[%c0_14, %c0_15, %c0_16] : memref<1x128x96xbf16, #tpu.memory_space<vmem>>, vector<1x128x96xbf16>
    %24 = vector.shape_cast %23 : vector<1x128x96xbf16> to vector<128x96xbf16>
    %25 = vector.shape_cast %22 : vector<128x96xbf16> to vector<1x128x96xbf16>
    tpu.vector_store %arg5[%c0_14, %c0_15, %c0_16], %25 {strides = array<i32>} : memref<1x128x96xbf16, #tpu.memory_space<vmem>>, vector<1x128x96xbf16>,
    return
  }
  func.func @transform_0(%arg0: i32, %arg1: i32) -> (i32, i32, i32) {
    %c0_i32 = arith.constant 0 : i32
    %c0_i32_0 = arith.constant 0 : i32
    return %arg1, %arg0, %c0_i32 : i32, i32, i32
  }
  func.func @transform_1(%arg0: i32, %arg1: i32) -> (i32, i32) {
    %c0_i32 = arith.constant 0 : i32
    %c0_i32_0 = arith.constant 0 : i32
    %c0_i32_1 = arith.constant 0 : i32
    return %c0_i32, %c0_i32_0 : i32, i32
  }
  func.func @transform_2(%arg0: i32, %arg1: i32) -> (i32, i32) {
    %c0_i32 = arith.constant 0 : i32
    %c0_i32_0 = arith.constant 0 : i32
    %c0_i32_1 = arith.constant 0 : i32
    return %c0_i32, %c0_i32_0 : i32, i32
  }
  func.func @transform_3(%arg0: i32, %arg1: i32) -> (i32, i32, i32) {
    %c0_i32 = arith.constant 0 : i32
    %c0_i32_0 = arith.constant 0 : i32
    return %arg1, %arg0, %c0_i32 : i32, i32, i32
  }
}

</mosaic_0001>

<llo_original>
// kernel: tpu_custom_call.1
$region0: #{tpu_custom_call.1}
  #allocation0 [shape = 'u32[]', space=smem, size = 0x4, offset = 0x4, fixed_abs, tag = 'smem constant byte address 0x4 - core index']
  #allocation1 [shape = 'u32[144,128]{1,0:T(1,128)}', space=vmem, size = 0x12000, scoped, tag = 'internal scratch']
  #allocation2 [shape = 'f32[128,96]{1,0:T(8,128)}', space=vmem, size = 0x10000, scoped, tag = 'scratch operand']
  %s0 = inlined_call_operand.vmem [shape: f32[2,128,32], index: 0, kind: input, shape index: {}]
  %s1 = inlined_call_operand.vmem [shape: f32[32,96], index: 1, kind: input, shape index: {}]
  %s2 = inlined_call_operand.vmem [shape: f32[1,96], index: 2, kind: input, shape index: {}]
  %s3 = inlined_call_operand.vmem [shape: bf16[2,128,96], index: 3, kind: output, shape index: {}]
  %s4 = sld [smem:[#allocation0]]
  $region49: #{tpu_custom_call.1} parent=0
    _
  %s6 = ssub.s32 1, %s4
  %s7 = scalar_select 0, %s6, %s4
  loop: start=0, step=1, limit=4
  $region2: #{tpu_custom_call.1} parent=0 // loop_pre_header
    _
  $region3: #{tpu_custom_call.1} parent=0 // loop_header
    %s9 = sphi 0, %s13
    %p10 = scmp.ge.s32.totalorder %s9, 4
    %s16 = sphi 0, %s28
    %s17 = sphi 0, %s24
    %s18 = sphi 0, %s16
    %s19 = sphi 0, %s17
    %s20 = sphi 0, %s18
    %s21 = sphi 0, %s19
    %s33 = sphi 0, %s35
    %s36 = sphi 0, %s33
    %s37 = sphi 0, %s36
    %s53 = sphi 0, %s37
    %s57 = sphi 0, %s57
    %s59 = sphi 0, %s57
    %s60 = sphi 0, %s59
    %s74 = sphi 0, %s60
    %s78 = sphi 0, %s78
    %s80 = sphi 0, %s78
    %s81 = sphi 0, %s80
    %s95 = sphi 0, %s81
    %s103 = sphi 0, %s105
    %s106 = sphi 0, %s103
    %s107 = sphi 0, %s106
    %s123 = sphi 0, %s107
  $region4: #{tpu_custom_call.1} parent=0 // loop_header_branch
    %12 = sbr.rel (%p10) target = $region8
  $region5: #{tpu_custom_call.1} parent=0 // loop_body
    %s14 = ssub.s32 %s9, 1
    %s15 = ssub.s32 %s9, 2
    %s22 = sadd.s32 1, %s17
    %p23 = scmp.ge.s32.totalorder %s22, 2
    %s24 = scalar_select %p23, 0, %s22
    %s25 = sadd.s32 1, %s16
    %s26 = scalar_select %p23, %s25, %s16
    %p27 = scmp.ge.s32.totalorder %s26, 1
    %s28 = scalar_select %p27, 0, %s26
    %s29 = ssub.s32 %s17, %s24
    %s30 = ssub.s32 %s16, %s28
    %s31 = sor.u32 %s29, %s30
    %p32 = scmp.eq.s32.totalorder %s31, 0
    %s34 = sadd.s32 %s33, 1
    %s35 = scalar_select %p32, %s33, %s34
    %p38 = pneg %p32
    %p39 = scmp.eq.s32.totalorder %s9, 1
    %p40 = por %p38, %p39
    %p41 = scmp.ne.s32.totalorder %s33, %s36
    %p42 = scmp.eq.s32.totalorder %s9, 0
    %p43 = por %p41, %p42
    %p44 = scmp.ne.s32.totalorder %s33, %s36
    %p45 = scmp.eq.s32.totalorder %s14, 1
    %p46 = por %p44, %p45
    %p47 = scmp.ne.s32.totalorder %s36, %s37
    %p48 = scmp.eq.s32.totalorder %s14, 0
    %p49 = por %p47, %p48
    %p50 = scmp.ne.s32.totalorder %s36, %s37
    %p51 = scmp.eq.s32.totalorder %s15, 1
    %p52 = por %p50, %p51
    %p54 = scmp.ne.s32.totalorder %s37, %s53
    %p55 = scmp.eq.s32.totalorder %s15, 0
    %p56 = por %p54, %p55
    %s58 = sadd.s32 %s57, 1
    %p61 = scmp.eq.s32.totalorder %s9, 1
    %p62 = scmp.ne.s32.totalorder %s57, %s59
    %p63 = scmp.eq.s32.totalorder %s9, 0
    %p64 = por %p62, %p63
    %p65 = scmp.ne.s32.totalorder %s57, %s59
    %p66 = scmp.eq.s32.totalorder %s14, 1
    %p67 = por %p65, %p66
    %p68 = scmp.ne.s32.totalorder %s59, %s60
    %p69 = scmp.eq.s32.totalorder %s14, 0
    %p70 = por %p68, %p69
    %p71 = scmp.ne.s32.totalorder %s59, %s60
    %p72 = scmp.eq.s32.totalorder %s15, 1
    %p73 = por %p71, %p72
    %p75 = scmp.ne.s32.totalorder %s60, %s74
    %p76 = scmp.eq.s32.totalorder %s15, 0
    %p77 = por %p75, %p76
    %s79 = sadd.s32 %s78, 1
    %p82 = scmp.eq.s32.totalorder %s9, 1
    %p83 = scmp.ne.s32.totalorder %s78, %s80
    %p84 = scmp.eq.s32.totalorder %s9, 0
    %p85 = por %p83, %p84
    %p86 = scmp.ne.s32.totalorder %s78, %s80
    %p87 = scmp.eq.s32.totalorder %s14, 1
    %p88 = por %p86, %p87
    %p89 = scmp.ne.s32.totalorder %s80, %s81
    %p90 = scmp.eq.s32.totalorder %s14, 0
    %p91 = por %p89, %p90
    %p92 = scmp.ne.s32.totalorder %s80, %s81
    %p93 = scmp.eq.s32.totalorder %s15, 1
    %p94 = por %p92, %p93
    %p96 = scmp.ne.s32.totalorder %s81, %s95
    %p97 = scmp.eq.s32.totalorder %s15, 0
    %p98 = por %p96, %p97
    %s99 = ssub.s32 %s17, %s24
    %s100 = ssub.s32 %s16, %s28
    %s101 = sor.u32 %s99, %s100
    %p102 = scmp.eq.s32.totalorder %s101, 0
    %s104 = sadd.s32 %s103, 1
    %s105 = scalar_select %p102, %s103, %s104
    %p108 = pneg %p102
    %p109 = scmp.eq.s32.totalorder %s9, 1
    %p110 = por %p108, %p109
    %p111 = scmp.ne.s32.totalorder %s103, %s106
    %p112 = scmp.eq.s32.totalorder %s9, 0
    %p113 = por %p111, %p112
    %p114 = scmp.ne.s32.totalorder %s103, %s106
    %p115 = scmp.eq.s32.totalorder %s14, 1
    %p116 = por %p114, %p115
    %p117 = scmp.ne.s32.totalorder %s106, %s107
    %p118 = scmp.eq.s32.totalorder %s14, 0
    %p119 = por %p117, %p118
    %p120 = scmp.ne.s32.totalorder %s106, %s107
    %p121 = scmp.eq.s32.totalorder %s15, 1
    %p122 = por %p120, %p121
    %p124 = scmp.ne.s32.totalorder %s107, %s123
    %p125 = scmp.eq.s32.totalorder %s15, 0
    %p126 = por %p124, %p125
    %p127 = scmp.le.s32.totalorder 1, %s9
    %p128 = scmp.lt.s32.totalorder %s9, 3
    %p129 = pnand %p127, %p128
    %p130 = pneg %p129
    // Predicated region
    $region9: #{tpu_custom_call.1} parent=5 // pred_check
      _
    $region10: #{tpu_custom_call.1} parent=5 // pred_check_branch
      %132 = sbr.rel (%p129) target = $region12
    $region11: #{tpu_custom_call.1} parent=5 // pred_region
      %s133 = ssub.s32 %s9, 1
      // Predicated region
      $region13: #{tpu_custom_call.1} parent=11 // pred_check
        %p134 = pneg %p70
      $region14: #{tpu_custom_call.1} parent=11 // pred_check_branch
        %136 = sbr.rel (%p134) target = $region16
      $region15: #{tpu_custom_call.1} parent=11 // pred_region
        _
      $region16: #{tpu_custom_call.1} parent=11 // pred_fallthru
        _
      // Predicated region
      $region17: #{tpu_custom_call.1} parent=11 // pred_check
        %p137 = pneg %p91
      $region18: #{tpu_custom_call.1} parent=11 // pred_check_branch
        %139 = sbr.rel (%p137) target = $region20
      $region19: #{tpu_custom_call.1} parent=11 // pred_region
        _
      $region20: #{tpu_custom_call.1} parent=11 // pred_fallthru
        _
    $region12: #{tpu_custom_call.1} parent=5 // pred_fallthru
      _
    %p140 = scmp.lt.s32.totalorder %s9, 2
    // Predicated region
    $region21: #{tpu_custom_call.1} parent=5 // pred_check
      %p141 = pneg %p140
    $region22: #{tpu_custom_call.1} parent=5 // pred_check_branch
      %143 = sbr.rel (%p141) target = $region24
    $region23: #{tpu_custom_call.1} parent=5 // pred_region
      // Predicated region
      $region25: #{tpu_custom_call.1} parent=23 // pred_check
        %p144 = pneg %p43
      $region26: #{tpu_custom_call.1} parent=23 // pred_check_branch
        %146 = sbr.rel (%p144) target = $region28
      $region27: #{tpu_custom_call.1} parent=23 // pred_region
        %s147 = smul.u32 16, %s16
        %p148 = scmp.lt.s32.totalorder %s17, 1
        %s149 = scalar_select %p148, %s17, 1
        %p150 = scmp.lt.s32.totalorder %s147, 15
        %s151 = scalar_select %p150, %s147, 15
        %s152 = smul.addr %s149, 16
        %s153 = sadd.s32 %s151, %s152
        %s154 = smul.addr %s153, 8
        %s155 = scalar_lea.vmem %s0, %s154
        %s156 = smul.u32 16, %s16
      $region28: #{tpu_custom_call.1} parent=23 // pred_fallthru
        _
    $region24: #{tpu_custom_call.1} parent=5 // pred_fallthru
      _
    %p157 = scmp.le.s32.totalorder 1, %s9
    %p158 = scmp.lt.s32.totalorder %s9, 3
    %p159 = pnand %p157, %p158
    %p160 = pneg %p159
    // Predicated region
    $region29: #{tpu_custom_call.1} parent=5 // pred_check
      _
    $region30: #{tpu_custom_call.1} parent=5 // pred_check_branch
      %162 = sbr.rel (%p159) target = $region32
    $region31: #{tpu_custom_call.1} parent=5 // pred_region
      %s163 = ssub.s32 %s9, 1
      %s164 = smul.u32 16, %s18
      %p165 = scmp.lt.s32.totalorder %s19, 1
      %s166 = scalar_select %p165, %s19, 1
      %p167 = scmp.lt.s32.totalorder %s164, 15
      %s168 = scalar_select %p167, %s164, 15
      %s169 = smul.addr %s166, 16
      %s170 = sadd.s32 %s168, %s169
      %s171 = smul.addr %s170, 8
      %s172 = scalar_lea.vmem %s0, %s171
      %p173 = pneg %p49
      %p174 = pneg %p46
      %p175 = pneg %p70
      %p176 = pneg %p67
      %p177 = pneg %p91
      %p178 = pneg %p88
      %p179 = pneg %p119
      %p180 = pneg %p116
      %s181 = smul.u32 16, %s18
      %p182 = scmp.lt.s32.totalorder %s19, 1
      %s183 = scalar_select %p182, %s19, 1
      %p184 = scmp.lt.s32.totalorder %s181, 15
      %s185 = scalar_select %p184, %s181, 15
      %s186 = smul.addr %s183, 16
      %s187 = sadd.s32 %s185, %s186
      %s188 = smul.addr %s187, 4
      %s189 = scalar_lea.vmem %s3, %s188
      %s190 = smul.u32 16, %s18
      %p191 = scmp.lt.s32.totalorder %s19, 1
      %s192 = scalar_select %p191, %s19, 1
      %p193 = scmp.lt.s32.totalorder %s190, 15
      %s194 = scalar_select %p193, %s190, 15
      %s195 = smul.addr %s192, 16
      %s196 = sadd.s32 %s194, %s195
      %s197 = smul.addr %s196, 8
      %s198 = scalar_lea.vmem %s0, %s197
      %s199 = smul.u32 16, %s18
      %s200 = smul.u32 16, %s18
      %p201 = scmp.lt.s32.totalorder %s19, 1
      %s202 = scalar_select %p201, %s19, 1
      %p203 = scmp.lt.s32.totalorder %s200, 15
      %s204 = scalar_select %p203, %s200, 15
      %s205 = smul.addr %s202, 16
      %s206 = sadd.s32 %s204, %s205
      %s207 = smul.addr %s206, 4
      %s208 = scalar_lea.vmem %s3, %s207
      %s209 = smul.u32 16, %s18
      %p210 = scmp.eq.s32.totalorder %s19, 0
      // Predicated region
      $region33: #{tpu_custom_call.1} parent=31 // pred_check
        %p211 = pneg %p210
      $region34: #{tpu_custom_call.1} parent=31 // pred_check_branch
        %213 = sbr.rel (%p211) target = $region36
      $region35: #{tpu_custom_call.1} parent=31 // pred_region
        %vm214 = vcmask 785408
        %215 = vst.msk [vmem:[#allocation2] sm:$0xff] %vm214, 0.0
        %216 = vst.msk [vmem:[#allocation2 + $0x8] sm:$0xff] %vm214, 0.0
        %217 = vst.msk [vmem:[#allocation2 + $0x10] sm:$0xff] %vm214, 0.0
        %218 = vst.msk [vmem:[#allocation2 + $0x18] sm:$0xff] %vm214, 0.0
        %219 = vst.msk [vmem:[#allocation2 + $0x20] sm:$0xff] %vm214, 0.0
        %220 = vst.msk [vmem:[#allocation2 + $0x28] sm:$0xff] %vm214, 0.0
        %221 = vst.msk [vmem:[#allocation2 + $0x30] sm:$0xff] %vm214, 0.0
        %222 = vst.msk [vmem:[#allocation2 + $0x38] sm:$0xff] %vm214, 0.0
        %223 = vst.msk [vmem:[#allocation2 + $0x40] sm:$0xff] %vm214, 0.0
        %224 = vst.msk [vmem:[#allocation2 + $0x48] sm:$0xff] %vm214, 0.0
        %225 = vst.msk [vmem:[#allocation2 + $0x50] sm:$0xff] %vm214, 0.0
        %226 = vst.msk [vmem:[#allocation2 + $0x58] sm:$0xff] %vm214, 0.0
        %227 = vst.msk [vmem:[#allocation2 + $0x60] sm:$0xff] %vm214, 0.0
        %228 = vst.msk [vmem:[#allocation2 + $0x68] sm:$0xff] %vm214, 0.0
        %229 = vst.msk [vmem:[#allocation2 + $0x70] sm:$0xff] %vm214, 0.0
        %230 = vst.msk [vmem:[#allocation2 + $0x78] sm:$0xff] %vm214, 0.0
      $region36: #{tpu_custom_call.1} parent=31 // pred_fallthru
        _
      %v231 = vld [vmem:[%s1] sm:$0xff]
      %v232 = vld [vmem:[%s1 + $0x8] sm:$0xff]
      %v233 = vld [vmem:[%s1 + $0x10] sm:$0xff]
      %v234 = vld [vmem:[%s1 + $0x18] sm:$0xff]
      %v235 = vld [vmem:[%s198] sm:$0xff]
      %v236 = vld [vmem:[%s198 + $0x8] sm:$0xff]
      %v237 = vld [vmem:[%s198 + $0x10] sm:$0xff]
      %v238 = vld [vmem:[%s198 + $0x18] sm:$0xff]
      %v239 = vld [vmem:[%s198 + $0x20] sm:$0xff]
      %v240 = vld [vmem:[%s198 + $0x28] sm:$0xff]
      %v241 = vld [vmem:[%s198 + $0x30] sm:$0xff]
      %v242 = vld [vmem:[%s198 + $0x38] sm:$0xff]
      %v243 = vld [vmem:[%s198 + $0x40] sm:$0xff]
      %v244 = vld [vmem:[%s198 + $0x48] sm:$0xff]
      %v245 = vld [vmem:[%s198 + $0x50] sm:$0xff]
      %v246 = vld [vmem:[%s198 + $0x58] sm:$0xff]
      %v247 = vld [vmem:[%s198 + $0x60] sm:$0xff]
      %v248 = vld [vmem:[%s198 + $0x68] sm:$0xff]
      %v249 = vld [vmem:[%s198 + $0x70] sm:$0xff]
      %v250 = vld [vmem:[%s198 + $0x78] sm:$0xff]
      %v251 = vld [vmem:[%s2] sm:$0x1]
      %v253 = vlaneseq
      %v254 = vshrl.u32 %v253, 7
      %v255 = vsub.s32 0, %v254
      %v256 = vrot.slane %v251, %v255
      %vm258 = vcmask 261120
      %v260 = vsel %vm258, %v235, 0
      %v263 = vsel %vm258, %v236, 0
      %v266 = vsel %vm258, %v237, 0
      %v269 = vsel %vm258, %v238, 0
      %v272 = vsel %vm258, %v239, 0
      %v275 = vsel %vm258, %v240, 0
      %v278 = vsel %vm258, %v241, 0
      %v281 = vsel %vm258, %v242, 0
      %v284 = vsel %vm258, %v243, 0
      %v287 = vsel %vm258, %v244, 0
      %v290 = vsel %vm258, %v245, 0
      %v293 = vsel %vm258, %v246, 0
      %v296 = vsel %vm258, %v247, 0
      %v299 = vsel %vm258, %v248, 0
      %v302 = vsel %vm258, %v249, 0
      %v305 = vsel %vm258, %v250, 0
      %307 = vmatprep.subr.mxu0 0.0
      %308 = vmatpush1.msra.mxu0 %v231
      %309 = vmatprep.subr.mxu0 0.0
      %310 = vmatpush1.msra.mxu0 %v232
      %311 = vmatprep.subr.mxu0 0.0
      %312 = vmatpush1.msra.mxu0 %v233
      %313 = vmatprep.subr.mxu0 0.0
      %314 = vmatpush1.msra.mxu0 %v234
      %315 = vmatprep.subr.mxu0 0.0
      %316 = vmatpush1.msra.mxu0 0.0
      %317 = vmatprep.subr.mxu0 0.0
      %318 = vmatpush1.msra.mxu0 0.0
      %319 = vmatprep.subr.mxu0 0.0
      %320 = vmatpush1.msra.mxu0 0.0
      %321 = vmatprep.subr.mxu0 0.0
      %322 = vmatpush1.msra.mxu0 0.0
      %323 = vmatprep.subr.mxu0 0.0
      %324 = vmatpush1.msra.mxu0 0.0
      %325 = vmatprep.subr.mxu0 0.0
      %326 = vmatpush1.msra.mxu0 0.0
      %327 = vmatprep.subr.mxu0 0.0
      %328 = vmatpush1.msra.mxu0 0.0
      %329 = vmatprep.subr.mxu0 0.0
      %330 = vmatpush1.msra.mxu0 0.0
      %331 = vmatprep.subr.mxu0 0.0
      %332 = vmatpush1.msra.mxu0 0.0
      %333 = vmatprep.subr.mxu0 0.0
      %334 = vmatpush1.msra.mxu0 0.0
      %335 = vmatprep.subr.mxu0 0.0
      %336 = vmatpush1.msra.mxu0 0.0
      %337 = vmatprep.subr.mxu0 0.0
      %338 = vmatpush1.msra.mxu0 0.0
      %339 = vmatprep.subr.mxu0 0.0
      %340 = vmatpush1.msra.mxu0 0.0
      %341 = vmatprep.subr.mxu0 0.0
      %342 = vmatpush1.msra.mxu0 0.0
      %343 = vmatprep.subr.mxu0 0.0
      %344 = vmatpush1.msra.mxu0 0.0
      %345 = vmatprep.subr.mxu0 0.0
      %346 = vmatpush1.msra.mxu0 0.0
      %347 = vmatprep.subr.mxu0 0.0
      %348 = vmatpush1.msra.mxu0 0.0
      %349 = vmatprep.subr.mxu0 0.0
      %350 = vmatpush1.msra.mxu0 0.0
      %351 = vmatprep.subr.mxu0 0.0
      %352 = vmatpush1.msra.mxu0 0.0
      %353 = vmatprep.subr.mxu0 0.0
      %354 = vmatpush1.msra.mxu0 0.0
      %355 = vmatprep.subr.mxu0 0.0
      %356 = vmatpush1.msra.mxu0 0.0
      %357 = vmatprep.subr.mxu0 0.0
      %358 = vmatpush1.msra.mxu0 0.0
      %359 = vmatprep.subr.mxu0 0.0
      %360 = vmatpush1.msra.mxu0 0.0
      %361 = vmatprep.subr.mxu0 0.0
      %362 = vmatpush1.msra.mxu0 0.0
      %363 = vmatprep.subr.mxu0 0.0
      %364 = vmatpush1.msra.mxu0 0.0
      %365 = vmatprep.subr.mxu0 0.0
      %366 = vmatpush1.msra.mxu0 0.0
      %367 = vmatprep.subr.mxu0 0.0
      %368 = vmatpush1.msra.mxu0 0.0
      %369 = vmatprep.subr.mxu0 0.0
      %370 = vmatpush1.msra.mxu0 0.0
      %371 = vmatprep.mubr.f32.mxu0 0.0
      %372 = vmatmul.mubr.f32.gmra.mrb[0].mxu0 %v260
      %v373 = vpop.f32.mrb[0].mxu0
      %v374 = vadd.f32 %v256, %v373
      %v375 = vpop.f32.mrb[0].mxu0
      %376 = vmatprep.mubr.f32.mxu0 0.0
      %377 = vmatmul.mubr.f32.gmra.mrb[0].mxu0 %v263
      %v378 = vpop.f32.mrb[0].mxu0
      %v379 = vadd.f32 %v256, %v378
      %v380 = vpop.f32.mrb[0].mxu0
      %381 = vmatprep.mubr.f32.mxu0 0.0
      %382 = vmatmul.mubr.f32.gmra.mrb[0].mxu0 %v266
      %v383 = vpop.f32.mrb[0].mxu0
      %v384 = vadd.f32 %v256, %v383
      %v385 = vpop.f32.mrb[0].mxu0
      %386 = vmatprep.mubr.f32.mxu0 0.0
      %387 = vmatmul.mubr.f32.gmra.mrb[0].mxu0 %v269
      %v388 = vpop.f32.mrb[0].mxu0
      %v389 = vadd.f32 %v256, %v388
      %v390 = vpop.f32.mrb[0].mxu0
      %391 = vmatprep.mubr.f32.mxu0 0.0
      %392 = vmatmul.mubr.f32.gmra.mrb[0].mxu0 %v272
      %v393 = vpop.f32.mrb[0].mxu0
      %v394 = vadd.f32 %v256, %v393
      %v395 = vpop.f32.mrb[0].mxu0
      %396 = vmatprep.mubr.f32.mxu0 0.0
      %397 = vmatmul.mubr.f32.gmra.mrb[0].mxu0 %v275
      %v398 = vpop.f32.mrb[0].mxu0
      %v399 = vadd.f32 %v256, %v398
      %v400 = vpop.f32.mrb[0].mxu0
      %401 = vmatprep.mubr.f32.mxu0 0.0
      %402 = vmatmul.mubr.f32.gmra.mrb[0].mxu0 %v278
      %v403 = vpop.f32.mrb[0].mxu0
      %v404 = vadd.f32 %v256, %v403
      %v405 = vpop.f32.mrb[0].mxu0
      %406 = vmatprep.mubr.f32.mxu0 0.0
      %407 = vmatmul.mubr.f32.gmra.mrb[0].mxu0 %v281
      %v408 = vpop.f32.mrb[0].mxu0
      %v409 = vadd.f32 %v256, %v408
      %v410 = vpop.f32.mrb[0].mxu0
      %411 = vmatprep.mubr.f32.mxu0 0.0
      %412 = vmatmul.mubr.f32.gmra.mrb[0].mxu0 %v284
      %v413 = vpop.f32.mrb[0].mxu0
      %v414 = vadd.f32 %v256, %v413
      %v415 = vpop.f32.mrb[0].mxu0
      %416 = vmatprep.mubr.f32.mxu0 0.0
      %417 = vmatmul.mubr.f32.gmra.mrb[0].mxu0 %v287
      %v418 = vpop.f32.mrb[0].mxu0
      %v419 = vadd.f32 %v256, %v418
      %v420 = vpop.f32.mrb[0].mxu0
      %421 = vmatprep.mubr.f32.mxu0 0.0
      %422 = vmatmul.mubr.f32.gmra.mrb[0].mxu0 %v290
      %v423 = vpop.f32.mrb[0].mxu0
      %v424 = vadd.f32 %v256, %v423
      %v425 = vpop.f32.mrb[0].mxu0
      %426 = vmatprep.mubr.f32.mxu0 0.0
      %427 = vmatmul.mubr.f32.gmra.mrb[0].mxu0 %v293
      %v428 = vpop.f32.mrb[0].mxu0
      %v429 = vadd.f32 %v256, %v428
      %v430 = vpop.f32.mrb[0].mxu0
      %431 = vmatprep.mubr.f32.mxu0 0.0
      %432 = vmatmul.mubr.f32.gmra.mrb[0].mxu0 %v296
      %v433 = vpop.f32.mrb[0].mxu0
      %v434 = vadd.f32 %v256, %v433
      %v435 = vpop.f32.mrb[0].mxu0
      %436 = vmatprep.mubr.f32.mxu0 0.0
      %437 = vmatmul.mubr.f32.gmra.mrb[0].mxu0 %v299
      %v438 = vpop.f32.mrb[0].mxu0
      %v439 = vadd.f32 %v256, %v438
      %v440 = vpop.f32.mrb[0].mxu0
      %441 = vmatprep.mubr.f32.mxu0 0.0
      %442 = vmatmul.mubr.f32.gmra.mrb[0].mxu0 %v302
      %v443 = vpop.f32.mrb[0].mxu0
      %v444 = vadd.f32 %v256, %v443
      %v445 = vpop.f32.mrb[0].mxu0
      %446 = vmatprep.mubr.f32.mxu0 0.0
      %447 = vmatmul.mubr.f32.gmra.mrb[0].mxu0 %v305
      %v448 = vpop.f32.mrb[0].mxu0
      %v449 = vadd.f32 %v256, %v448
      %v450 = vpop.f32.mrb[0].mxu0
      %451 = vdwg.mxu0
      %v452 = vld [vmem:[#allocation2] sm:$0xff]
      %v453 = vld [vmem:[#allocation2 + $0x8] sm:$0xff]
      %v454 = vld [vmem:[#allocation2 + $0x10] sm:$0xff]
      %v455 = vld [vmem:[#allocation2 + $0x18] sm:$0xff]
      %v456 = vld [vmem:[#allocation2 + $0x20] sm:$0xff]
      %v457 = vld [vmem:[#allocation2 + $0x28] sm:$0xff]
      %v458 = vld [vmem:[#allocation2 + $0x30] sm:$0xff]
      %v459 = vld [vmem:[#allocation2 + $0x38] sm:$0xff]
      %v460 = vld [vmem:[#allocation2 + $0x40] sm:$0xff]
      %v461 = vld [vmem:[#allocation2 + $0x48] sm:$0xff]
      %v462 = vld [vmem:[#allocation2 + $0x50] sm:$0xff]
      %v463 = vld [vmem:[#allocation2 + $0x58] sm:$0xff]
      %v464 = vld [vmem:[#allocation2 + $0x60] sm:$0xff]
      %v465 = vld [vmem:[#allocation2 + $0x68] sm:$0xff]
      %v466 = vld [vmem:[#allocation2 + $0x70] sm:$0xff]
      %v467 = vld [vmem:[#allocation2 + $0x78] sm:$0xff]
      %v468 = vsub.f32 %v374, %v452
      %v469 = vsub.f32 %v379, %v453
      %v470 = vsub.f32 %v384, %v454
      %v471 = vsub.f32 %v389, %v455
      %v472 = vsub.f32 %v394, %v456
      %v473 = vsub.f32 %v399, %v457
      %v474 = vsub.f32 %v404, %v458
      %v475 = vsub.f32 %v409, %v459
      %v476 = vsub.f32 %v414, %v460
      %v477 = vsub.f32 %v419, %v461
      %v478 = vsub.f32 %v424, %v462
      %v479 = vsub.f32 %v429, %v463
      %v480 = vsub.f32 %v434, %v464
      %v481 = vsub.f32 %v439, %v465
      %v482 = vsub.f32 %v444, %v466
      %v483 = vsub.f32 %v449, %v467
      %v484 = vmul.f32 %v468, 0.5
      %v485 = vmul.f32 %v469, 0.5
      %v486 = vmul.f32 %v470, 0.5
      %v487 = vmul.f32 %v471, 0.5
      %v488 = vmul.f32 %v472, 0.5
      %v489 = vmul.f32 %v473, 0.5
      %v490 = vmul.f32 %v474, 0.5
      %v491 = vmul.f32 %v475, 0.5
      %v492 = vmul.f32 %v476, 0.5
      %v493 = vmul.f32 %v477, 0.5
      %v494 = vmul.f32 %v478, 0.5
      %v495 = vmul.f32 %v479, 0.5
      %v496 = vmul.f32 %v480, 0.5
      %v497 = vmul.f32 %v481, 0.5
      %v498 = vmul.f32 %v482, 0.5
      %v499 = vmul.f32 %v483, 0.5
      %v500 = vadd.f32 %v452, %v484
      %v501 = vadd.f32 %v453, %v485
      %v502 = vadd.f32 %v454, %v486
      %v503 = vadd.f32 %v455, %v487
      %v504 = vadd.f32 %v456, %v488
      %v505 = vadd.f32 %v457, %v489
      %v506 = vadd.f32 %v458, %v490
      %v507 = vadd.f32 %v459, %v491
      %v508 = vadd.f32 %v460, %v492
      %v509 = vadd.f32 %v461, %v493
      %v510 = vadd.f32 %v462, %v494
      %v511 = vadd.f32 %v463, %v495
      %v512 = vadd.f32 %v464, %v496
      %v513 = vadd.f32 %v465, %v497
      %v514 = vadd.f32 %v466, %v498
      %v515 = vadd.f32 %v467, %v499
      %vm516 = vcmp.ge.f32.partialorder %v500, 1.0
      %vm517 = vcmp.ge.f32.partialorder %v501, 1.0
      %vm518 = vcmp.ge.f32.partialorder %v502, 1.0
      %vm519 = vcmp.ge.f32.partialorder %v503, 1.0
      %vm520 = vcmp.ge.f32.partialorder %v504, 1.0
      %vm521 = vcmp.ge.f32.partialorder %v505, 1.0
      %vm522 = vcmp.ge.f32.partialorder %v506, 1.0
      %vm523 = vcmp.ge.f32.partialorder %v507, 1.0
      %vm524 = vcmp.ge.f32.partialorder %v508, 1.0
      %vm525 = vcmp.ge.f32.partialorder %v509, 1.0
      %vm526 = vcmp.ge.f32.partialorder %v510, 1.0
      %vm527 = vcmp.ge.f32.partialorder %v511, 1.0
      %vm528 = vcmp.ge.f32.partialorder %v512, 1.0
      %vm529 = vcmp.ge.f32.partialorder %v513, 1.0
      %vm530 = vcmp.ge.f32.partialorder %v514, 1.0
      %vm531 = vcmp.ge.f32.partialorder %v515, 1.0
      %v532 = vsel %vm516, 0.0, %v500
      %v533 = vsel %vm517, 0.0, %v501
      %v534 = vsel %vm518, 0.0, %v502
      %v535 = vsel %vm519, 0.0, %v503
      %v536 = vsel %vm520, 0.0, %v504
      %v537 = vsel %vm521, 0.0, %v505
      %v538 = vsel %vm522, 0.0, %v506
      %v539 = vsel %vm523, 0.0, %v507
      %v540 = vsel %vm524, 0.0, %v508
      %v541 = vsel %vm525, 0.0, %v509
      %v542 = vsel %vm526, 0.0, %v510
      %v543 = vsel %vm527, 0.0, %v511
      %v544 = vsel %vm528, 0.0, %v512
      %v545 = vsel %vm529, 0.0, %v513
      %v546 = vsel %vm530, 0.0, %v514
      %v547 = vsel %vm531, 0.0, %v515
      %vm548 = vcmask 785408
      %549 = vst.msk [vmem:[#allocation2] sm:$0xff] %vm548, %v532
      %550 = vst.msk [vmem:[#allocation2 + $0x8] sm:$0xff] %vm548, %v533
      %551 = vst.msk [vmem:[#allocation2 + $0x10] sm:$0xff] %vm548, %v534
      %552 = vst.msk [vmem:[#allocation2 + $0x18] sm:$0xff] %vm548, %v535
      %553 = vst.msk [vmem:[#allocation2 + $0x20] sm:$0xff] %vm548, %v536
      %554 = vst.msk [vmem:[#allocation2 + $0x28] sm:$0xff] %vm548, %v537
      %555 = vst.msk [vmem:[#allocation2 + $0x30] sm:$0xff] %vm548, %v538
      %556 = vst.msk [vmem:[#allocation2 + $0x38] sm:$0xff] %vm548, %v539
      %557 = vst.msk [vmem:[#allocation2 + $0x40] sm:$0xff] %vm548, %v540
      %558 = vst.msk [vmem:[#allocation2 + $0x48] sm:$0xff] %vm548, %v541
      %559 = vst.msk [vmem:[#allocation2 + $0x50] sm:$0xff] %vm548, %v542
      %560 = vst.msk [vmem:[#allocation2 + $0x58] sm:$0xff] %vm548, %v543
      %561 = vst.msk [vmem:[#allocation2 + $0x60] sm:$0xff] %vm548, %v544
      %562 = vst.msk [vmem:[#allocation2 + $0x68] sm:$0xff] %vm548, %v545
      %563 = vst.msk [vmem:[#allocation2 + $0x70] sm:$0xff] %vm548, %v546
      %564 = vst.msk [vmem:[#allocation2 + $0x78] sm:$0xff] %vm548, %v547
      %v565 = vsel %vm516, 1, 0
      %v566 = vsel %vm517, 1, 0
      %v567 = vsel %vm518, 1, 0
      %v568 = vsel %vm519, 1, 0
      %v569 = vsel %vm520, 1, 0
      %v570 = vsel %vm521, 1, 0
      %v571 = vsel %vm522, 1, 0
      %v572 = vsel %vm523, 1, 0
      %v573 = vsel %vm524, 1, 0
      %v574 = vsel %vm525, 1, 0
      %v575 = vsel %vm526, 1, 0
      %v576 = vsel %vm527, 1, 0
      %v577 = vsel %vm528, 1, 0
      %v578 = vsel %vm529, 1, 0
      %v579 = vsel %vm530, 1, 0
      %v580 = vsel %vm531, 1, 0
      %v581 = vcvt.s32.f32 %v565
      %v582 = vcvt.s32.f32 %v566
      %v583 = vcvt.s32.f32 %v567
      %v584 = vcvt.s32.f32 %v568
      %v585 = vcvt.s32.f32 %v569
      %v586 = vcvt.s32.f32 %v570
      %v587 = vcvt.s32.f32 %v571
      %v588 = vcvt.s32.f32 %v572
      %v589 = vcvt.s32.f32 %v573
      %v590 = vcvt.s32.f32 %v574
      %v591 = vcvt.s32.f32 %v575
      %v592 = vcvt.s32.f32 %v576
      %v593 = vcvt.s32.f32 %v577
      %v594 = vcvt.s32.f32 %v578
      %v595 = vcvt.s32.f32 %v579
      %v596 = vcvt.s32.f32 %v580
      %v597 = vpack.c.bf16 %v582, %v581
      %v598 = vpack.c.bf16 %v584, %v583
      %v599 = vpack.c.bf16 %v586, %v585
      %v600 = vpack.c.bf16 %v588, %v587
      %v601 = vpack.c.bf16 %v590, %v589
      %v602 = vpack.c.bf16 %v592, %v591
      %v603 = vpack.c.bf16 %v594, %v593
      %v604 = vpack.c.bf16 %v596, %v595
      %v613 = vunpack.c.l.b16 %v597
      %v614 = vunpack.c.h.b16 %v597
      %v615 = vunpack.c.l.b16 %v598
      %v616 = vunpack.c.h.b16 %v598
      %v617 = vunpack.c.l.b16 %v599
      %v618 = vunpack.c.h.b16 %v599
      %v619 = vunpack.c.l.b16 %v600
      %v620 = vunpack.c.h.b16 %v600
      %v621 = vunpack.c.l.b16 %v601
      %v622 = vunpack.c.h.b16 %v601
      %v623 = vunpack.c.l.b16 %v602
      %v624 = vunpack.c.h.b16 %v602
      %v625 = vunpack.c.l.b16 %v603
      %v626 = vunpack.c.h.b16 %v603
      %v627 = vunpack.c.l.b16 %v604
      %v628 = vunpack.c.h.b16 %v604
      %v629 = vpack.c.b16 %v613, %v613
      %v630 = vpack.c.b16 %v614, %v614
      %v631 = vpack.c.b16 %v615, %v615
      %v632 = vpack.c.b16 %v616, %v616
      %v633 = vpack.c.b16 %v617, %v617
      %v634 = vpack.c.b16 %v618, %v618
      %v635 = vpack.c.b16 %v619, %v619
      %v636 = vpack.c.b16 %v620, %v620
      %v637 = vpack.c.b16 %v621, %v621
      %v638 = vpack.c.b16 %v622, %v622
      %v639 = vpack.c.b16 %v623, %v623
      %v640 = vpack.c.b16 %v624, %v624
      %v641 = vpack.c.b16 %v625, %v625
      %v642 = vpack.c.b16 %v626, %v626
      %v643 = vpack.c.b16 %v627, %v627
      %v644 = vpack.c.b16 %v628, %v628
      %vm661 = vcmask 781312
      %662 = vst.msk [vmem:[%s208] sm:$0xf] %vm661, %v629
      %663 = vst.msk [vmem:[%s208 + $0x4] sm:$0xf] %vm661, %v630
      %664 = vst.msk [vmem:[%s208 + $0x8] sm:$0xf] %vm661, %v631
      %665 = vst.msk [vmem:[%s208 + $0xc] sm:$0xf] %vm661, %v632
      %666 = vst.msk [vmem:[%s208 + $0x10] sm:$0xf] %vm661, %v633
      %667 = vst.msk [vmem:[%s208 + $0x14] sm:$0xf] %vm661, %v634
      %668 = vst.msk [vmem:[%s208 + $0x18] sm:$0xf] %vm661, %v635
      %669 = vst.msk [vmem:[%s208 + $0x1c] sm:$0xf] %vm661, %v636
      %670 = vst.msk [vmem:[%s208 + $0x20] sm:$0xf] %vm661, %v637
      %671 = vst.msk [vmem:[%s208 + $0x24] sm:$0xf] %vm661, %v638
      %672 = vst.msk [vmem:[%s208 + $0x28] sm:$0xf] %vm661, %v639
      %673 = vst.msk [vmem:[%s208 + $0x2c] sm:$0xf] %vm661, %v640
      %674 = vst.msk [vmem:[%s208 + $0x30] sm:$0xf] %vm661, %v641
      %675 = vst.msk [vmem:[%s208 + $0x34] sm:$0xf] %vm661, %v642
      %676 = vst.msk [vmem:[%s208 + $0x38] sm:$0xf] %vm661, %v643
      %677 = vst.msk [vmem:[%s208 + $0x3c] sm:$0xf] %vm661, %v644
      %s678 = smul.u32 16, %s18
      %p679 = scmp.lt.s32.totalorder %s19, 1
      %s680 = scalar_select %p679, %s19, 1
      %p681 = scmp.lt.s32.totalorder %s678, 15
      %s682 = scalar_select %p681, %s678, 15
      %s683 = smul.addr %s680, 16
      %s684 = sadd.s32 %s682, %s683
      %s685 = smul.addr %s684, 4
      %s686 = scalar_lea.vmem %s3, %s685
      // Predicated region
      $region37: #{tpu_custom_call.1} parent=31 // pred_check
        %p687 = pneg %p116
      $region38: #{tpu_custom_call.1} parent=31 // pred_check_branch
        %689 = sbr.rel (%p687) target = $region40
      $region39: #{tpu_custom_call.1} parent=31 // pred_region
        %s690 = smul.u32 16, %s18
      $region40: #{tpu_custom_call.1} parent=31 // pred_fallthru
        _
    $region32: #{tpu_custom_call.1} parent=5 // pred_fallthru
      _
    %p691 = scmp.le.s32.totalorder 2, %s9
    // Predicated region
    $region41: #{tpu_custom_call.1} parent=5 // pred_check
      %p692 = pneg %p691
    $region42: #{tpu_custom_call.1} parent=5 // pred_check_branch
      %694 = sbr.rel (%p692) target = $region44
    $region43: #{tpu_custom_call.1} parent=5 // pred_region
      %s695 = ssub.s32 %s9, 2
      // Predicated region
      $region45: #{tpu_custom_call.1} parent=43 // pred_check
        %p696 = pneg %p122
      $region46: #{tpu_custom_call.1} parent=43 // pred_check_branch
        %698 = sbr.rel (%p696) target = $region48
      $region47: #{tpu_custom_call.1} parent=43 // pred_region
        %s699 = smul.u32 16, %s20
        %p700 = scmp.lt.s32.totalorder %s21, 1
        %s701 = scalar_select %p700, %s21, 1
        %p702 = scmp.lt.s32.totalorder %s699, 15
        %s703 = scalar_select %p702, %s699, 15
        %s704 = smul.addr %s701, 16
        %s705 = sadd.s32 %s703, %s704
        %s706 = smul.addr %s705, 4
        %s707 = scalar_lea.vmem %s3, %s706
      $region48: #{tpu_custom_call.1} parent=43 // pred_fallthru
        _
    $region44: #{tpu_custom_call.1} parent=5 // pred_fallthru
      _
  $region6: #{tpu_custom_call.1} parent=0 // loop_footer
    %s13 = sadd.s32 1, %s9
  $region7: #{tpu_custom_call.1} parent=0 // loop_footer_branch
    %8 = sbr.rel target = $region3
  $region8: #{tpu_custom_call.1} parent=0 // loop_exit
    _

</llo_original>
